<compile_context>
chip_gen: v7x
topology: tpu7x:2x2x1
jax: 0.10.0
libtpu: 0.0.40
codegen_flags: <defaults>
</compile_context>

<pallas_src>
import functools

import jax
import jax.numpy as jnp
from jax import lax
from jax.experimental import pallas as pl
from jax.experimental.pallas import tpu as pltpu


def _convblock_mxu_kernel(x_ref, w_ref, b_ref, o_ref, stack_ref, *,
                          taps, Cin, Nw, linear):
    """Standard conv path, one batch element per grid step.

    x_ref     : (1, P*Cin, Lpad)  bf16 phase-split, flattened, zero-padded input
    w_ref     : (Cout, K*K*Cin)   bf16 BN-folded weights, tap-major contraction
    b_ref     : (Cout, 1)         f32 folded BN bias
    o_ref     : (1, Cout, Nw)     f32 wide output (cols >= Wo cropped outside)
    stack_ref : (K*K*Cin, Nw)     bf16 VMEM scratch = stacked tap operand
    """
    # Copy each tap directly from the ref into the stacked RHS (contraction axis);
    # offsets are static so these are plain (possibly lane-rotated) VMEM copies.
    for t, (r0, off) in enumerate(taps):
        stack_ref[t * Cin:(t + 1) * Cin, :] = x_ref[0, r0:r0 + Cin, off:off + Nw]

    # Single MXU matmul with contraction depth K*K*Cin, f32 accumulation.
    y = jnp.dot(w_ref[...], stack_ref[...], preferred_element_type=jnp.float32)
    y = y + b_ref[...]                     # folded BN bias
    if not linear:
        # TODO(synk): QuantReLU fake-quant treated as identity -> plain ReLU.
        y = jnp.maximum(y, 0.0)
    o_ref[0] = y.astype(o_ref.dtype)


def _convblock_dw_kernel(x_ref, w_ref, b_ref, o_ref, *, taps, Cin, Nw, linear):
    """Depthwise path (groups == Cin == Cout): per-channel FMAs on the VPU.

    x_ref : (1, P*Cin, Lpad) bf16
    w_ref : (K*K, Cin, 1)    f32, tap index on the LEADING axis
    b_ref : (Cin, 1)         f32
    o_ref : (1, Cin, Nw)     f32
    """
    w = w_ref[...]                                    # load once
    b = b_ref[...]
    acc = jnp.zeros((Cin, Nw), jnp.float32)
    for t, (r0, off) in enumerate(taps):
        tap = x_ref[0, r0:r0 + Cin, off:off + Nw].astype(jnp.float32)
        acc = acc + tap * w[t]                        # (Cin, Nw) * (Cin, 1)
    y = acc + b
    if not linear:
        y = jnp.maximum(y, 0.0)
    o_ref[0] = y.astype(o_ref.dtype)


def convblock_forward(x_nchw, params, *, kernel_size, stride=1, padding=0,
                      dw=False, linear=False, bn_eps=1e-5):
    """ConvBlock forward (inference-mode BN). NCHW in, NCHW out (float32)."""
    x = x_nchw.astype(jnp.float32)
    B, Cin, H, W = x.shape
    K, s, p = kernel_size, stride, padding
    w = params["w"].astype(jnp.float32)                       # PyTorch OIHW
    Cout = w.shape[0]
    if dw:
        assert Cout == Cin and w.shape[1] == 1, \
            "depthwise path supports out_channels == in_channels"

    T = K * K

    # ---- fold BN (running stats) into the conv weight + a per-channel bias ----
    scale = params["bn_g"] / jnp.sqrt(params["bn_v"] + bn_eps)            # (Cout,)
    bias = (params["bn_b"] - params["bn_m"] * scale).reshape(Cout, 1)
    bias = bias.astype(jnp.float32)

    if dw:
        # (K*K, Cin, 1): leading-axis tap index; keep the VALU math in f32.
        w_k = jnp.transpose(w[:, 0] * scale[:, None, None], (1, 2, 0))    # (K,K,Cin)
        w_k = w_k.reshape(T, Cin, 1).astype(jnp.float32)
    else:
        # (Cout, K*K*Cin): tap-major stacked contraction, bf16 for the MXU.
        w_k = jnp.transpose(w * scale[:, None, None, None], (0, 2, 3, 1)) # (Cout,K,K,Cin)
        w_k = w_k.reshape(Cout, T * Cin).astype(jnp.bfloat16)

    # ---- geometry: stride-s handled by an s x s phase split of the padded image,
    # so the kernel runs a stride-1 problem over phase planes and computes ONLY
    # the needed output pixels.  out[i, j] reads phase (ky%s, kx%s) at lane
    # offset (ky//s)*Wph + (kx//s) + i*Wph + j.
    Hp, Wp = H + 2 * p, W + 2 * p
    Ho = (Hp - K) // s + 1
    Wo = (Wp - K) // s + 1
    Hph = -(-Hp // s)                        # ceil(Hp / s): rows per phase plane
    Wph = -(-Wp // s)                        # cols per phase plane
    P = s * s                                # number of phase planes
    Nw = Ho * Wph                            # wide output lanes; cols >= Wo cropped
    Lflat = Hph * Wph
    Lpad = ((Lflat + (K - 1) + 127) // 128) * 128   # lane-aligned + tap overrun slack
    # NOTE: for real face_mobile widths (W >= ~56) additionally padding Wph to a
    # multiple of 128 would make the row component of every tap offset
    # vreg-aligned (residual kx shift -> XLU); skipped here (W=16 would blow up).

    # pad / phase-split / flatten once in XLA (cheap, fused); kernel sees zeros in pad
    xp = jnp.pad(x, ((0, 0), (0, 0),
                     (p, p + Hph * s - Hp), (p, p + Wph * s - Wp)))
    xph = xp.reshape(B, Cin, Hph, s, Wph, s)
    xph = jnp.transpose(xph, (0, 3, 5, 1, 2, 4))     # (B, sy, sx, Cin, Hph, Wph)
    xph = xph.reshape(B, P * Cin, Lflat)
    xph = jnp.pad(xph, ((0, 0), (0, 0), (0, Lpad - Lflat))).astype(jnp.bfloat16)

    # static per-tap (phase row offset, lane offset) table
    taps = tuple((((ky % s) * s + (kx % s)) * Cin,
                  (ky // s) * Wph + (kx // s))
                 for ky in range(K) for kx in range(K))

    if dw:
        kernel = functools.partial(_convblock_dw_kernel, taps=taps, Cin=Cin,
                                   Nw=Nw, linear=linear)
        w_spec = pl.BlockSpec((T, Cin, 1), lambda b: (0, 0, 0))
        scratch_shapes = []
        flops = 2 * B * Cin * T * Nw
        stack_bytes = 0
        w_bytes = T * Cin * 4
    else:
        kernel = functools.partial(_convblock_mxu_kernel, taps=taps, Cin=Cin,
                                   Nw=Nw, linear=linear)
        w_spec = pl.BlockSpec((Cout, T * Cin), lambda b: (0, 0))
        scratch_shapes = [pltpu.VMEM((T * Cin, Nw), jnp.bfloat16)]
        flops = 2 * B * Cout * T * Cin * Nw
        stack_bytes = T * Cin * Nw * 2
        w_bytes = Cout * T * Cin * 2

    x_block = (1, P * Cin, Lpad)
    x_index = lambda b: (b, 0, 0)
    x_spec = pl.BlockSpec(x_block, x_index)
    in_bufs = 2
    if K == 1:
        # 1x1 conv is a single tiny matmul and purely DMA-bound: deepen input
        # buffering to hide HBM latency (silently fall back if unsupported).
        try:
            x_spec = pl.BlockSpec(x_block, x_index, pipeline_mode=pl.Buffered(3))
            in_bufs = 3
        except (AttributeError, TypeError):
            pass

    # size the VMEM limit from the actual per-step working set (not a hardcoded
    # 32 MiB); cap at 64 MiB so it stays within v7x's smaller physical VMEM.
    in_bytes = P * Cin * Lpad * 2
    out_bytes = Cout * Nw * 4
    need = (in_bufs * in_bytes + 2 * out_bytes + 2 * (w_bytes + Cout * 4)
            + stack_bytes)
    vmem_limit = int(min(64 * 1024 * 1024, max(16 * 1024 * 1024, 4 * need)))

    bytes_accessed = B * in_bytes + w_bytes + Cout * 4 + B * out_bytes

    out_wide = pl.pallas_call(
        kernel,
        out_shape=jax.ShapeDtypeStruct((B, Cout, Nw), jnp.float32),
        grid=(B,),
        in_specs=[x_spec, w_spec, pl.BlockSpec((Cout, 1), lambda b: (0, 0))],
        out_specs=pl.BlockSpec((1, Cout, Nw), lambda b: (b, 0, 0)),
        scratch_shapes=scratch_shapes,
        compiler_params=pltpu.CompilerParams(
            dimension_semantics=("parallel",),
            vmem_limit_bytes=vmem_limit),
        cost_estimate=pl.CostEstimate(flops=flops, transcendentals=0,
                                      bytes_accessed=bytes_accessed),
    )(xph, w_k, bias)

    # crop the cross-row garbage columns (cheap fused XLA slice); stride is
    # already handled by the phase split, so no subsampling is needed.
    out = out_wide.reshape(B, Cout, Ho, Wph)[:, :, :, :Wo]
    assert out.shape == (B, Cout, Ho, Wo)
    return out


def _reference(x_nchw, params, *, kernel_size, stride=1, padding=0,
               dw=False, linear=False, bn_eps=1e-5):
    """Pure-JAX NCHW reference of the same block (float semantics)."""
    x = x_nchw.astype(jnp.float32)
    Cin = x.shape[1]
    w = params["w"].astype(jnp.float32)
    dn = ("NCHW", "OIHW", "NCHW")
    y = lax.conv_general_dilated(
        x, w, (stride, stride), ((padding, padding), (padding, padding)),
        dimension_numbers=dn, feature_group_count=Cin if dw else 1)
    g = params["bn_g"][None, :, None, None]
    b = params["bn_b"][None, :, None, None]
    m = params["bn_m"][None, :, None, None]
    v = params["bn_v"][None, :, None, None]
    y = (y - m) / jnp.sqrt(v + bn_eps) * g + b
    if not linear:
        y = jnp.maximum(y, 0.0)
    return y


def make_params(key, in_channels, out_channels, kernel_size, dw=False):
    Cin, Cout, K = in_channels, out_channels, kernel_size
    ks = jax.random.split(key, 5)
    fan_in = (1 if dw else Cin) * K * K
    bound = (1.0 / fan_in) ** 0.5
    w_shape = (Cout, 1, K, K) if dw else (Cout, Cin, K, K)
    return {
        "w": jax.random.uniform(ks[0], w_shape, jnp.float32, -bound, bound),
        "bn_g": jax.random.uniform(ks[1], (Cout,), jnp.float32, 0.5, 1.5),
        "bn_b": jax.random.uniform(ks[2], (Cout,), jnp.float32, -0.2, 0.2),
        "bn_m": jax.random.uniform(ks[3], (Cout,), jnp.float32, -0.1, 0.1),
        "bn_v": jax.random.uniform(ks[4], (Cout,), jnp.float32, 0.5, 1.5),
    }


if __name__ == "__main__":
    key = jax.random.PRNGKey(0)
    B = 2
    configs = [
        # (name,            Cin, Cout, K, stride, pad, dw,    linear, H,  W)
        ("conv3x3_s1_relu",   4,   8,  3, 1,      1,  False, False, 16, 16),
        ("dw3x3_s1_linear",   8,   8,  3, 1,      1,  True,  True,  16, 16),
        ("conv1x1_s1_relu",   8,  16,  1, 1,      0,  False, False, 16, 16),
        ("conv3x3_s2_relu",   4,   8,  3, 2,      1,  False, False, 16, 16),
    ]
    for i, (name, Cin, Cout, K, s, p, dw, linear, H, W) in enumerate(configs):
        kx, kp = jax.random.split(jax.random.fold_in(key, i))
        x = jax.random.normal(kx, (B, Cin, H, W), jnp.float32)   # NCHW like PyTorch
        params = make_params(kp, Cin, Cout, K, dw=dw)

        out = jax.block_until_ready(convblock_forward(
            x, params, kernel_size=K, stride=s, padding=p, dw=dw, linear=linear))
        ref = jax.block_until_ready(_reference(
            x, params, kernel_size=K, stride=s, padding=p, dw=dw, linear=linear))

        assert out.shape == ref.shape, (name, out.shape, ref.shape)
        err = float(jnp.max(jnp.abs(out - ref)))
        # bf16 conv operands with an f32 accumulator: tolerance loosened vs f32.
        assert jnp.allclose(out, ref, atol=3e-2, rtol=3e-2), (name, err)

    print("KERNEL_OK")
</pallas_src>

<mosaic_0001>
module attributes {stable_mosaic.version = 11 : i64} {
  func.func @_convblock_mxu_kernel(%arg0: i32, %arg1: memref<1x4x384xbf16, #tpu.memory_space<vmem>>, %arg2: memref<8x36xbf16, #tpu.memory_space<vmem>>, %arg3: memref<8x1xf32, #tpu.memory_space<vmem>>, %arg4: memref<1x8x288xf32, #tpu.memory_space<vmem>>, %arg5: memref<36x288xbf16, #tpu.memory_space<vmem>>) attributes {dimension_semantics = [#tpu.dimension_semantics<parallel>], iteration_bounds = array<i64: 2>, scalar_prefetch = 0 : i64, scratch_operands = 1 : i64, tpu.core_type = #tpu.core_type<tc>, window_params = [{transform_indices = @transform_0, window_bounds = array<i64: 1, 4, 384>}, {pipeline_mode = #tpu.pipeline_mode<synchronous>, transform_indices = @transform_1, window_bounds = array<i64: 8, 36>}, {pipeline_mode = #tpu.pipeline_mode<synchronous>, transform_indices = @transform_2, window_bounds = array<i64: 8, 1>}, {transform_indices = @transform_3, window_bounds = array<i64: 1, 8, 288>}]} {
    %c0 = arith.constant 0 : index
    %c0_0 = arith.constant 0 : index
    %c0_1 = arith.constant 0 : index
    %0 = vector.load %arg1[%c0, %c0_0, %c0_1] : memref<1x4x384xbf16, #tpu.memory_space<vmem>>, vector<1x4x288xbf16>
    %1 = vector.shape_cast %0 : vector<1x4x288xbf16> to vector<4x288xbf16>
    %c0_2 = arith.constant 0 : index
    %c0_3 = arith.constant 0 : index
    %2 = vector.load %arg5[%c0_2, %c0_3] : memref<36x288xbf16, #tpu.memory_space<vmem>>, vector<4x288xbf16>
    tpu.vector_store %arg5[%c0_2, %c0_3], %1 {strides = array<i32>} : memref<36x288xbf16, #tpu.memory_space<vmem>>, vector<4x288xbf16>,
    %c0_4 = arith.constant 0 : index
    %c0_5 = arith.constant 0 : index
    %c1 = arith.constant 1 : index
    %3 = vector.load %arg1[%c0_4, %c0_5, %c1] : memref<1x4x384xbf16, #tpu.memory_space<vmem>>, vector<1x4x288xbf16>
    %4 = vector.shape_cast %3 : vector<1x4x288xbf16> to vector<4x288xbf16>
    %c4 = arith.constant 4 : index
    %c0_6 = arith.constant 0 : index
    %5 = vector.load %arg5[%c4, %c0_6] : memref<36x288xbf16, #tpu.memory_space<vmem>>, vector<4x288xbf16>
    tpu.vector_store %arg5[%c4, %c0_6], %4 {strides = array<i32>} : memref<36x288xbf16, #tpu.memory_space<vmem>>, vector<4x288xbf16>,
    %c0_7 = arith.constant 0 : index
    %c0_8 = arith.constant 0 : index
    %c2 = arith.constant 2 : index
    %6 = vector.load %arg1[%c0_7, %c0_8, %c2] : memref<1x4x384xbf16, #tpu.memory_space<vmem>>, vector<1x4x288xbf16>
    %7 = vector.shape_cast %6 : vector<1x4x288xbf16> to vector<4x288xbf16>
    %c8 = arith.constant 8 : index
    %c0_9 = arith.constant 0 : index
    %8 = vector.load %arg5[%c8, %c0_9] : memref<36x288xbf16, #tpu.memory_space<vmem>>, vector<4x288xbf16>
    tpu.vector_store %arg5[%c8, %c0_9], %7 {strides = array<i32>} : memref<36x288xbf16, #tpu.memory_space<vmem>>, vector<4x288xbf16>,
    %c0_10 = arith.constant 0 : index
    %c0_11 = arith.constant 0 : index
    %c18 = arith.constant 18 : index
    %9 = vector.load %arg1[%c0_10, %c0_11, %c18] : memref<1x4x384xbf16, #tpu.memory_space<vmem>>, vector<1x4x288xbf16>
    %10 = vector.shape_cast %9 : vector<1x4x288xbf16> to vector<4x288xbf16>
    %c12 = arith.constant 12 : index
    %c0_12 = arith.constant 0 : index
    %11 = vector.load %arg5[%c12, %c0_12] : memref<36x288xbf16, #tpu.memory_space<vmem>>, vector<4x288xbf16>
    tpu.vector_store %arg5[%c12, %c0_12], %10 {strides = array<i32>} : memref<36x288xbf16, #tpu.memory_space<vmem>>, vector<4x288xbf16>,
    %c0_13 = arith.constant 0 : index
    %c0_14 = arith.constant 0 : index
    %c19 = arith.constant 19 : index
    %12 = vector.load %arg1[%c0_13, %c0_14, %c19] : memref<1x4x384xbf16, #tpu.memory_space<vmem>>, vector<1x4x288xbf16>
    %13 = vector.shape_cast %12 : vector<1x4x288xbf16> to vector<4x288xbf16>
    %c16 = arith.constant 16 : index
    %c0_15 = arith.constant 0 : index
    %14 = vector.load %arg5[%c16, %c0_15] : memref<36x288xbf16, #tpu.memory_space<vmem>>, vector<4x288xbf16>
    tpu.vector_store %arg5[%c16, %c0_15], %13 {strides = array<i32>} : memref<36x288xbf16, #tpu.memory_space<vmem>>, vector<4x288xbf16>,
    %c0_16 = arith.constant 0 : index
    %c0_17 = arith.constant 0 : index
    %c20 = arith.constant 20 : index
    %15 = vector.load %arg1[%c0_16, %c0_17, %c20] : memref<1x4x384xbf16, #tpu.memory_space<vmem>>, vector<1x4x288xbf16>
    %16 = vector.shape_cast %15 : vector<1x4x288xbf16> to vector<4x288xbf16>
    %c20_18 = arith.constant 20 : index
    %c0_19 = arith.constant 0 : index
    %17 = vector.load %arg5[%c20_18, %c0_19] : memref<36x288xbf16, #tpu.memory_space<vmem>>, vector<4x288xbf16>
    tpu.vector_store %arg5[%c20_18, %c0_19], %16 {strides = array<i32>} : memref<36x288xbf16, #tpu.memory_space<vmem>>, vector<4x288xbf16>,
    %c0_20 = arith.constant 0 : index
    %c0_21 = arith.constant 0 : index
    %c36 = arith.constant 36 : index
    %18 = vector.load %arg1[%c0_20, %c0_21, %c36] : memref<1x4x384xbf16, #tpu.memory_space<vmem>>, vector<1x4x288xbf16>
    %19 = vector.shape_cast %18 : vector<1x4x288xbf16> to vector<4x288xbf16>
    %c24 = arith.constant 24 : index
    %c0_22 = arith.constant 0 : index
    %20 = vector.load %arg5[%c24, %c0_22] : memref<36x288xbf16, #tpu.memory_space<vmem>>, vector<4x288xbf16>
    tpu.vector_store %arg5[%c24, %c0_22], %19 {strides = array<i32>} : memref<36x288xbf16, #tpu.memory_space<vmem>>, vector<4x288xbf16>,
    %c0_23 = arith.constant 0 : index
    %c0_24 = arith.constant 0 : index
    %c37 = arith.constant 37 : index
    %21 = vector.load %arg1[%c0_23, %c0_24, %c37] : memref<1x4x384xbf16, #tpu.memory_space<vmem>>, vector<1x4x288xbf16>
    %22 = vector.shape_cast %21 : vector<1x4x288xbf16> to vector<4x288xbf16>
    %c28 = arith.constant 28 : index
    %c0_25 = arith.constant 0 : index
    %23 = vector.load %arg5[%c28, %c0_25] : memref<36x288xbf16, #tpu.memory_space<vmem>>, vector<4x288xbf16>
    tpu.vector_store %arg5[%c28, %c0_25], %22 {strides = array<i32>} : memref<36x288xbf16, #tpu.memory_space<vmem>>, vector<4x288xbf16>,
    %c0_26 = arith.constant 0 : index
    %c0_27 = arith.constant 0 : index
    %c38 = arith.constant 38 : index
    %24 = vector.load %arg1[%c0_26, %c0_27, %c38] : memref<1x4x384xbf16, #tpu.memory_space<vmem>>, vector<1x4x288xbf16>
    %25 = vector.shape_cast %24 : vector<1x4x288xbf16> to vector<4x288xbf16>
    %c32 = arith.constant 32 : index
    %c0_28 = arith.constant 0 : index
    %26 = vector.load %arg5[%c32, %c0_28] : memref<36x288xbf16, #tpu.memory_space<vmem>>, vector<4x288xbf16>
    tpu.vector_store %arg5[%c32, %c0_28], %25 {strides = array<i32>} : memref<36x288xbf16, #tpu.memory_space<vmem>>, vector<4x288xbf16>,
    %c0_29 = arith.constant 0 : index
    %c0_30 = arith.constant 0 : index
    %27 = vector.load %arg2[%c0_29, %c0_30] : memref<8x36xbf16, #tpu.memory_space<vmem>>, vector<8x36xbf16>
    %c0_31 = arith.constant 0 : index
    %c0_32 = arith.constant 0 : index
    %28 = vector.load %arg5[%c0_31, %c0_32] : memref<36x288xbf16, #tpu.memory_space<vmem>>, vector<36x288xbf16>
    %cst = arith.constant dense<0.000000e+00> : vector<8x288xf32>
    %29 = tpu.matmul %27, %28, %cst {dimension_numbers = #tpu.dot_dimension_numbers<[1], [0], [0], [1], [0, 0, 1, 1], [], []>} : vector<8x36xbf16>, vector<36x288xbf16>, vector<8x288xf32> -> vector<8x288xf32>
    %c0_33 = arith.constant 0 : index
    %c0_34 = arith.constant 0 : index
    %30 = vector.load %arg3[%c0_33, %c0_34] : memref<8x1xf32, #tpu.memory_space<vmem>>, vector<8x1xf32>
    %31 = vector.broadcast %30 : vector<8x1xf32> to vector<8x288xf32>
    %32 = arith.addf %29, %31 : vector<8x288xf32>
    %cst_35 = arith.constant 0.000000e+00 : f32
    %33 = vector.broadcast %cst_35 : f32 to vector<8x288xf32>
    %34 = arith.maximumf %32, %33 : vector<8x288xf32>
    %c0_36 = arith.constant 0 : index
    %c0_37 = arith.constant 0 : index
    %c0_38 = arith.constant 0 : index
    %35 = vector.load %arg4[%c0_36, %c0_37, %c0_38] : memref<1x8x288xf32, #tpu.memory_space<vmem>>, vector<1x8x288xf32>
    %36 = vector.shape_cast %35 : vector<1x8x288xf32> to vector<8x288xf32>
    %37 = vector.shape_cast %34 : vector<8x288xf32> to vector<1x8x288xf32>
    tpu.vector_store %arg4[%c0_36, %c0_37, %c0_38], %37 {strides = array<i32>} : memref<1x8x288xf32, #tpu.memory_space<vmem>>, vector<1x8x288xf32>,
    return
  }
  func.func @transform_0(%arg0: i32) -> (i32, i32, i32) {
    %c0_i32 = arith.constant 0 : i32
    %c0_i32_0 = arith.constant 0 : i32
    %c0_i32_1 = arith.constant 0 : i32
    return %arg0, %c0_i32, %c0_i32_0 : i32, i32, i32
  }
  func.func @transform_1(%arg0: i32) -> (i32, i32) {
    %c0_i32 = arith.constant 0 : i32
    %c0_i32_0 = arith.constant 0 : i32
    %c0_i32_1 = arith.constant 0 : i32
    return %c0_i32, %c0_i32_0 : i32, i32
  }
  func.func @transform_2(%arg0: i32) -> (i32, i32) {
    %c0_i32 = arith.constant 0 : i32
    %c0_i32_0 = arith.constant 0 : i32
    %c0_i32_1 = arith.constant 0 : i32
    return %c0_i32, %c0_i32_0 : i32, i32
  }
  func.func @transform_3(%arg0: i32) -> (i32, i32, i32) {
    %c0_i32 = arith.constant 0 : i32
    %c0_i32_0 = arith.constant 0 : i32
    %c0_i32_1 = arith.constant 0 : i32
    return %arg0, %c0_i32, %c0_i32_0 : i32, i32, i32
  }
}

</mosaic_0001>

<llo_original>
// kernel: tpu_custom_call.1
$region0: #{tpu_custom_call.1}
  #allocation0 [shape = 'u32[]', space=smem, size = 0x4, offset = 0x4, fixed_abs, tag = 'smem constant byte address 0x4 - core index']
  #allocation1 [shape = 'u32[144,128]{1,0:T(1,128)}', space=vmem, size = 0x12000, scoped, tag = 'internal scratch']
  #allocation2 [shape = 'bf16[36,288]{1,0:T(8,128)(2,1)}', space=vmem, size = 0x7800, scoped, tag = 'scratch operand']
  %s0 = inlined_call_operand.hbm [shape: bf16[2,4,384], index: 0, kind: input, shape index: {}]
  %s1 = inlined_call_operand.vmem [shape: bf16[8,36], index: 1, kind: input, shape index: {}]
  %s2 = inlined_call_operand.vmem [shape: f32[8,1], index: 2, kind: input, shape index: {}]
  %s3 = inlined_call_operand.hbm [shape: f32[2,8,288], index: 3, kind: output, shape index: {}]
  %s4 = sld [smem:[#allocation0]]
  $region49: #{tpu_custom_call.1} parent=0
    _
  %s6 = ssub.s32 1, %s4
  %s7 = scalar_select 0, %s6, %s4
  $region1: #{tpu_custom_call.1} parent=0
    #allocation3 [shape = 'u8[6144]{0}', space=vmem, size = 0x1800, scoped, tag = 'input window, operand 0']
    #allocation4 [shape = 's32[2]{0}', space=sflag, size = 0x8, scoped, tag = 'scoped memory for tpu_custom_call.1']
    #allocation5 [shape = 's32[2]{0}', space=sflag, size = 0x8, scoped, tag = 'scoped memory for tpu_custom_call.1']
    #allocation6 [shape = 'u8[24576]{0}', space=vmem, size = 0x6000, scoped, tag = 'output window, operand 0']
    %8 = vsyncpa [#allocation4], 0
    %s9 = scalar_lea.sflag [#allocation4], 1
    %10 = vsyncpa %s9, 0
    %11 = vsyncpa [#allocation5], 0
    %s12 = scalar_lea.sflag [#allocation5], 1
    %13 = vsyncpa %s12, 0
    loop: start=0, step=1, limit=4
    $region2: #{tpu_custom_call.1} parent=1 // loop_pre_header
      _
    $region3: #{tpu_custom_call.1} parent=1 // loop_header
      %s15 = sphi 0, %s19
      %p16 = scmp.ge.s32.totalorder %s15, 4
      %s25 = sphi 0, %s27
      %s28 = sphi 0, %s25
      %s29 = sphi 0, %s28
      %s45 = sphi 0, %s29
      %s49 = sphi 0, %s49
      %s51 = sphi 0, %s49
      %s52 = sphi 0, %s51
      %s66 = sphi 0, %s52
      %s70 = sphi 0, %s70
      %s72 = sphi 0, %s70
      %s73 = sphi 0, %s72
      %s87 = sphi 0, %s73
      %s93 = sphi 0, %s95
      %s96 = sphi 0, %s93
      %s97 = sphi 0, %s96
      %s113 = sphi 0, %s97
    $region4: #{tpu_custom_call.1} parent=1 // loop_header_branch
      %18 = sbr.rel (%p16) target = $region8
    $region5: #{tpu_custom_call.1} parent=1 // loop_body
      %s20 = ssub.s32 %s15, 1
      %s21 = ssub.s32 %s15, 2
      %s22 = sadd.s32 %s15, 1
      %s23 = ssub.s32 %s15, %s22
      %p24 = scmp.eq.s32.totalorder %s23, 0
      %s26 = sadd.s32 %s25, 1
      %s27 = scalar_select %p24, %s25, %s26
      %p30 = pneg %p24
      %p31 = scmp.eq.s32.totalorder %s15, 1
      %p32 = por %p30, %p31
      %p33 = scmp.ne.s32.totalorder %s25, %s28
      %p34 = scmp.eq.s32.totalorder %s15, 0
      %p35 = por %p33, %p34
      %p36 = scmp.ne.s32.totalorder %s25, %s28
      %p37 = scmp.eq.s32.totalorder %s20, 1
      %p38 = por %p36, %p37
      %p39 = scmp.ne.s32.totalorder %s28, %s29
      %p40 = scmp.eq.s32.totalorder %s20, 0
      %p41 = por %p39, %p40
      %p42 = scmp.ne.s32.totalorder %s28, %s29
      %p43 = scmp.eq.s32.totalorder %s21, 1
      %p44 = por %p42, %p43
      %p46 = scmp.ne.s32.totalorder %s29, %s45
      %p47 = scmp.eq.s32.totalorder %s21, 0
      %p48 = por %p46, %p47
      %s50 = sadd.s32 %s49, 1
      %p53 = scmp.eq.s32.totalorder %s15, 1
      %p54 = scmp.ne.s32.totalorder %s49, %s51
      %p55 = scmp.eq.s32.totalorder %s15, 0
      %p56 = por %p54, %p55
      %p57 = scmp.ne.s32.totalorder %s49, %s51
      %p58 = scmp.eq.s32.totalorder %s20, 1
      %p59 = por %p57, %p58
      %p60 = scmp.ne.s32.totalorder %s51, %s52
      %p61 = scmp.eq.s32.totalorder %s20, 0
      %p62 = por %p60, %p61
      %p63 = scmp.ne.s32.totalorder %s51, %s52
      %p64 = scmp.eq.s32.totalorder %s21, 1
      %p65 = por %p63, %p64
      %p67 = scmp.ne.s32.totalorder %s52, %s66
      %p68 = scmp.eq.s32.totalorder %s21, 0
      %p69 = por %p67, %p68
      %s71 = sadd.s32 %s70, 1
      %p74 = scmp.eq.s32.totalorder %s15, 1
      %p75 = scmp.ne.s32.totalorder %s70, %s72
      %p76 = scmp.eq.s32.totalorder %s15, 0
      %p77 = por %p75, %p76
      %p78 = scmp.ne.s32.totalorder %s70, %s72
      %p79 = scmp.eq.s32.totalorder %s20, 1
      %p80 = por %p78, %p79
      %p81 = scmp.ne.s32.totalorder %s72, %s73
      %p82 = scmp.eq.s32.totalorder %s20, 0
      %p83 = por %p81, %p82
      %p84 = scmp.ne.s32.totalorder %s72, %s73
      %p85 = scmp.eq.s32.totalorder %s21, 1
      %p86 = por %p84, %p85
      %p88 = scmp.ne.s32.totalorder %s73, %s87
      %p89 = scmp.eq.s32.totalorder %s21, 0
      %p90 = por %p88, %p89
      %s91 = ssub.s32 %s15, %s22
      %p92 = scmp.eq.s32.totalorder %s91, 0
      %s94 = sadd.s32 %s93, 1
      %s95 = scalar_select %p92, %s93, %s94
      %p98 = pneg %p92
      %p99 = scmp.eq.s32.totalorder %s15, 1
      %p100 = por %p98, %p99
      %p101 = scmp.ne.s32.totalorder %s93, %s96
      %p102 = scmp.eq.s32.totalorder %s15, 0
      %p103 = por %p101, %p102
      %p104 = scmp.ne.s32.totalorder %s93, %s96
      %p105 = scmp.eq.s32.totalorder %s20, 1
      %p106 = por %p104, %p105
      %p107 = scmp.ne.s32.totalorder %s96, %s97
      %p108 = scmp.eq.s32.totalorder %s20, 0
      %p109 = por %p107, %p108
      %p110 = scmp.ne.s32.totalorder %s96, %s97
      %p111 = scmp.eq.s32.totalorder %s21, 1
      %p112 = por %p110, %p111
      %p114 = scmp.ne.s32.totalorder %s97, %s113
      %p115 = scmp.eq.s32.totalorder %s21, 0
      %p116 = por %p114, %p115
      %p117 = scmp.le.s32.totalorder 1, %s15
      %p118 = scmp.lt.s32.totalorder %s15, 3
      %p119 = pnand %p117, %p118
      %p120 = pneg %p119
      // Predicated region
      $region9: #{tpu_custom_call.1} parent=5 // pred_check
        _
      $region10: #{tpu_custom_call.1} parent=5 // pred_check_branch
        %122 = sbr.rel (%p119) target = $region12
      $region11: #{tpu_custom_call.1} parent=5 // pred_region
        %s123 = ssub.s32 %s15, 1
        // Predicated region
        $region13: #{tpu_custom_call.1} parent=11 // pred_check
          %p124 = pneg %p62
        $region14: #{tpu_custom_call.1} parent=11 // pred_check_branch
          %126 = sbr.rel (%p124) target = $region16
        $region15: #{tpu_custom_call.1} parent=11 // pred_region
          _
        $region16: #{tpu_custom_call.1} parent=11 // pred_fallthru
          _
        // Predicated region
        $region17: #{tpu_custom_call.1} parent=11 // pred_check
          %p127 = pneg %p83
        $region18: #{tpu_custom_call.1} parent=11 // pred_check_branch
          %129 = sbr.rel (%p127) target = $region20
        $region19: #{tpu_custom_call.1} parent=11 // pred_region
          _
        $region20: #{tpu_custom_call.1} parent=11 // pred_fallthru
          _
      $region12: #{tpu_custom_call.1} parent=5 // pred_fallthru
        _
      %p130 = scmp.lt.s32.totalorder %s15, 2
      // Predicated region
      $region21: #{tpu_custom_call.1} parent=5 // pred_check
        %p131 = pneg %p130
      $region22: #{tpu_custom_call.1} parent=5 // pred_check_branch
        %133 = sbr.rel (%p131) target = $region24
      $region23: #{tpu_custom_call.1} parent=5 // pred_region
        // Predicated region
        $region25: #{tpu_custom_call.1} parent=23 // pred_check
          %p134 = pneg %p35
        $region26: #{tpu_custom_call.1} parent=23 // pred_check_branch
          %136 = sbr.rel (%p134) target = $region28
        $region27: #{tpu_custom_call.1} parent=23 // pred_region
          %s137 = sand.u32 %s25, 1
          %s138 = scalar_lea.sflag [#allocation4], %s137
          %s139 = sand.u32 %s25, 1
          %s140 = smul.addr %s139, 6
          %s141 = scalar_lea.vmem [#allocation3], %s140
          %s143 = ssub.s32 96, 96
          %144 = vsyncadd %s138, %s143
          %s145 = smul.addr %s15, 3
          %s146 = smul.addr %s145, 32
          %s147 = scalar_lea.hbm %s0, %s146
          %s149 = sshll.u32 %s141, 4
          %s150 = int_to_ptr.vmem [resolvable:$true] %s149
          %152 = dma.hbm_to_vmem [thread:$0]  %s147, 96, %s150, %s138
        $region28: #{tpu_custom_call.1} parent=23 // pred_fallthru
          _
      $region24: #{tpu_custom_call.1} parent=5 // pred_fallthru
        _
      %p153 = scmp.le.s32.totalorder 1, %s15
      %p154 = scmp.lt.s32.totalorder %s15, 3
      %p155 = pnand %p153, %p154
      %p156 = pneg %p155
      // Predicated region
      $region29: #{tpu_custom_call.1} parent=5 // pred_check
        _
      $region30: #{tpu_custom_call.1} parent=5 // pred_check_branch
        %158 = sbr.rel (%p155) target = $region32
      $region31: #{tpu_custom_call.1} parent=5 // pred_region
        %s159 = ssub.s32 %s15, 1
        %s160 = sand.u32 %s28, 1
        %s161 = scalar_lea.sflag [#allocation4], %s160
        %s162 = sand.u32 %s28, 1
        %s163 = smul.addr %s162, 6
        %s164 = scalar_lea.vmem [#allocation3], %s163
        // Predicated region
        $region33: #{tpu_custom_call.1} parent=31 // pred_check
          %p165 = pneg %p41
        $region34: #{tpu_custom_call.1} parent=31 // pred_check_branch
          %167 = sbr.rel (%p165) target = $region36
        $region35: #{tpu_custom_call.1} parent=31 // pred_region
          %168 = dma.done %s161, 96
        $region36: #{tpu_custom_call.1} parent=31 // pred_fallthru
          _
        %s169 = sand.u32 %s28, 1
        %s170 = scalar_lea.sflag [#allocation4], %s169
        %s171 = sand.u32 %s28, 1
        %s172 = smul.addr %s171, 6
        %s173 = scalar_lea.vmem [#allocation3], %s172
        %p174 = pneg %p41
        %p175 = pneg %p38
        %p176 = pneg %p62
        %p177 = pneg %p59
        %p178 = pneg %p83
        %p179 = pneg %p80
        %p180 = pneg %p109
        %p181 = pneg %p106
        %s182 = sand.u32 %s96, 1
        %s183 = scalar_lea.sflag [#allocation5], %s182
        %s184 = sand.u32 %s96, 1
        %s185 = smul.addr %s184, 24
        %s186 = scalar_lea.vmem [#allocation6], %s185
        %v188 = vld [vmem:[%s164] sm:$0x3f]
        %v190 = vcombine.high %v188, %v188
        %v192 = vunpack.c.l.s4 1983009808
        %v193 = vunpack.c.0.s8 %v192
        %v194 = vlaneseq
        %v195 = vshrl.u32 %v194, 7
        %v196 = vsub.s32 %v193, %v195
        %v197 = vrot.slane %v188, %v196
        %v199 = vunpack.c.l.s4 1983009808
        %v200 = vunpack.c.0.s8 %v199
        %v201 = vlaneseq
        %v202 = vshrl.u32 %v201, 7
        %v203 = vsub.s32 %v200, %v202
        %v204 = vrot.slane %v190, %v203
        %207 = vst [vmem:[#allocation2] sm:$0x33] %v197
        %vm208 = vcmask 254976
        %209 = vst.msk [vmem:[#allocation2 + $0x8] sm:$0x3] %vm208, %v204
        %v210 = vld [vmem:[%s164] sm:$0x3f]
        %v212 = vcombine.low %v210, %v210
        %v214 = vunpack.c.l.s4 1983009808
        %v215 = vunpack.c.0.s8 %v214
        %v216 = vlaneseq
        %v217 = vshrl.u32 %v216, 7
        %v218 = vsub.s32 %v215, %v217
        %v219 = vrot.slane %v212, %v218
        %v221 = vunpack.c.l.s4 1983009808
        %v222 = vunpack.c.0.s8 %v221
        %v223 = vlaneseq
        %v224 = vshrl.u32 %v223, 7
        %v225 = vsub.s32 %v222, %v224
        %v226 = vrot.slane %v210, %v225
        %227 = vrot.lane.b32.xlu0 %v219, 127
        %v228 = vpop.permute.xlu0 %227
        %229 = vrot.lane.b32.xlu0 %v226, 127
        %v230 = vpop.permute.xlu0 %229
        %v231 = vrot.slane %v228, 4
        %v232 = vrot.slane %v230, 4
        %vm233 = vcmask 1043456
        %v234 = vsel %vm233, %v231, %v232
        %vm235 = vcmask 1039360
        %v236 = vsel %vm235, %v228, %v234
        %239 = vst [vmem:[#allocation2] sm:$0xcc] %v236
        %vm240 = vcmask 257026
        %241 = vst.msk [vmem:[#allocation2 + $0x8] sm:$0xc] %vm240, %v230
        %v242 = vld [vmem:[%s164] sm:$0x3f]
        %v244 = vcombine.high %v242, %v242
        %v246 = vunpack.c.l.s4 1983009808
        %v247 = vunpack.c.0.s8 %v246
        %v248 = vlaneseq
        %v249 = vshrl.u32 %v248, 7
        %v250 = vsub.s32 %v247, %v249
        %v251 = vrot.slane %v242, %v250
        %v253 = vunpack.c.l.s4 1983009808
        %v254 = vunpack.c.0.s8 %v253
        %v255 = vlaneseq
        %v256 = vshrl.u32 %v255, 7
        %v257 = vsub.s32 %v254, %v256
        %v258 = vrot.slane %v244, %v257
        %259 = vrot.lane.b32.xlu0 %v251, 126
        %v260 = vpop.permute.xlu0 %259
        %261 = vrot.lane.b32.xlu0 %v258, 126
        %v262 = vpop.permute.xlu0 %261
        %v263 = vrot.slane %v260, 4
        %v264 = vrot.slane %v262, 4
        %v265 = vsel %vm233, %v263, %v264
        %vm266 = vcmask 1031168
        %v267 = vsel %vm266, %v260, %v265
        %270 = vst [vmem:[#allocation2 + $0xc] sm:$0x33] %v267
        %271 = vst.msk [vmem:[#allocation2 + $0x14] sm:$0x3] %vm208, %v262
        %v272 = vld [vmem:[%s164] sm:$0x3f]
        %v274 = vcombine.low %v272, %v272
        %v276 = vunpack.c.l.s4 1983009808
        %v277 = vunpack.c.0.s8 %v276
        %v278 = vlaneseq
        %v279 = vshrl.u32 %v278, 7
        %v280 = vsub.s32 %v277, %v279
        %v281 = vrot.slane %v274, %v280
        %v283 = vunpack.c.l.s4 1983009808
        %v284 = vunpack.c.0.s8 %v283
        %v285 = vlaneseq
        %v286 = vshrl.u32 %v285, 7
        %v287 = vsub.s32 %v284, %v286
        %v288 = vrot.slane %v272, %v287
        %289 = vrot.lane.b32.xlu0 %v281, 110
        %v290 = vpop.permute.xlu0 %289
        %291 = vrot.lane.b32.xlu0 %v288, 110
        %v292 = vpop.permute.xlu0 %291
        %v293 = vrot.slane %v290, 4
        %v294 = vrot.slane %v292, 4
        %v295 = vsel %vm233, %v293, %v294
        %vm296 = vcmask 900096
        %v297 = vsel %vm296, %v290, %v295
        %300 = vst [vmem:[#allocation2 + $0xc] sm:$0xcc] %v297
        %301 = vst.msk [vmem:[#allocation2 + $0x14] sm:$0xc] %vm240, %v292
        %v302 = vld [vmem:[%s164] sm:$0x3f]
        %v304 = vcombine.high %v302, %v302
        %v306 = vunpack.c.l.s4 1983009808
        %v307 = vunpack.c.0.s8 %v306
        %v308 = vlaneseq
        %v309 = vshrl.u32 %v308, 7
        %v310 = vsub.s32 %v307, %v309
        %v311 = vrot.slane %v302, %v310
        %v313 = vunpack.c.l.s4 1983009808
        %v314 = vunpack.c.0.s8 %v313
        %v315 = vlaneseq
        %v316 = vshrl.u32 %v315, 7
        %v317 = vsub.s32 %v314, %v316
        %v318 = vrot.slane %v304, %v317
        %319 = vrot.lane.b32.xlu0 %v311, 109
        %v320 = vpop.permute.xlu0 %319
        %321 = vrot.lane.b32.xlu0 %v318, 109
        %v322 = vpop.permute.xlu0 %321
        %v323 = vrot.slane %v320, 4
        %v324 = vrot.slane %v322, 4
        %v325 = vsel %vm233, %v323, %v324
        %vm326 = vcmask 891904
        %v327 = vsel %vm326, %v320, %v325
        %330 = vst [vmem:[#allocation2 + $0x18] sm:$0x33] %v327
        %331 = vst.msk [vmem:[#allocation2 + $0x20] sm:$0x3] %vm208, %v322
        %v332 = vld [vmem:[%s164] sm:$0x3f]
        %v334 = vcombine.low %v332, %v332
        %v336 = vunpack.c.l.s4 1983009808
        %v337 = vunpack.c.0.s8 %v336
        %v338 = vlaneseq
        %v339 = vshrl.u32 %v338, 7
        %v340 = vsub.s32 %v337, %v339
        %v341 = vrot.slane %v334, %v340
        %v343 = vunpack.c.l.s4 1983009808
        %v344 = vunpack.c.0.s8 %v343
        %v345 = vlaneseq
        %v346 = vshrl.u32 %v345, 7
        %v347 = vsub.s32 %v344, %v346
        %v348 = vrot.slane %v332, %v347
        %349 = vrot.lane.b32.xlu0 %v341, 108
        %v350 = vpop.permute.xlu0 %349
        %351 = vrot.lane.b32.xlu0 %v348, 108
        %v352 = vpop.permute.xlu0 %351
        %v353 = vrot.slane %v350, 4
        %v354 = vrot.slane %v352, 4
        %v355 = vsel %vm233, %v353, %v354
        %vm356 = vcmask 883712
        %v357 = vsel %vm356, %v350, %v355
        %360 = vst [vmem:[#allocation2 + $0x18] sm:$0xcc] %v357
        %361 = vst.msk [vmem:[#allocation2 + $0x20] sm:$0xc] %vm240, %v352
        %v362 = vld [vmem:[%s164] sm:$0x3f]
        %v364 = vcombine.high %v362, %v362
        %v366 = vunpack.c.l.s4 1983009808
        %v367 = vunpack.c.0.s8 %v366
        %v368 = vlaneseq
        %v369 = vshrl.u32 %v368, 7
        %v370 = vsub.s32 %v367, %v369
        %v371 = vrot.slane %v362, %v370
        %v373 = vunpack.c.l.s4 1983009808
        %v374 = vunpack.c.0.s8 %v373
        %v375 = vlaneseq
        %v376 = vshrl.u32 %v375, 7
        %v377 = vsub.s32 %v374, %v376
        %v378 = vrot.slane %v364, %v377
        %379 = vrot.lane.b32.xlu0 %v371, 92
        %v380 = vpop.permute.xlu0 %379
        %381 = vrot.lane.b32.xlu0 %v378, 92
        %v382 = vpop.permute.xlu0 %381
        %v383 = vrot.slane %v380, 4
        %v384 = vrot.slane %v382, 4
        %v385 = vsel %vm233, %v383, %v384
        %vm386 = vcmask 752640
        %v387 = vsel %vm386, %v380, %v385
        %390 = vst [vmem:[#allocation2 + $0x24] sm:$0x33] %v387
        %391 = vst.msk [vmem:[#allocation2 + $0x2c] sm:$0x3] %vm208, %v382
        %v392 = vld [vmem:[%s164] sm:$0x3f]
        %v394 = vcombine.low %v392, %v392
        %v396 = vunpack.c.l.s4 1983009808
        %v397 = vunpack.c.0.s8 %v396
        %v398 = vlaneseq
        %v399 = vshrl.u32 %v398, 7
        %v400 = vsub.s32 %v397, %v399
        %v401 = vrot.slane %v394, %v400
        %v403 = vunpack.c.l.s4 1983009808
        %v404 = vunpack.c.0.s8 %v403
        %v405 = vlaneseq
        %v406 = vshrl.u32 %v405, 7
        %v407 = vsub.s32 %v404, %v406
        %v408 = vrot.slane %v392, %v407
        %409 = vrot.lane.b32.xlu0 %v401, 91
        %v410 = vpop.permute.xlu0 %409
        %411 = vrot.lane.b32.xlu0 %v408, 91
        %v412 = vpop.permute.xlu0 %411
        %v413 = vrot.slane %v410, 4
        %v414 = vrot.slane %v412, 4
        %v415 = vsel %vm233, %v413, %v414
        %vm416 = vcmask 744448
        %v417 = vsel %vm416, %v410, %v415
        %420 = vst [vmem:[#allocation2 + $0x24] sm:$0xcc] %v417
        %421 = vst.msk [vmem:[#allocation2 + $0x2c] sm:$0xc] %vm240, %v412
        %v422 = vld [vmem:[%s164] sm:$0x3f]
        %v424 = vcombine.high %v422, %v422
        %v426 = vunpack.c.l.s4 1983009808
        %v427 = vunpack.c.0.s8 %v426
        %v428 = vlaneseq
        %v429 = vshrl.u32 %v428, 7
        %v430 = vsub.s32 %v427, %v429
        %v431 = vrot.slane %v422, %v430
        %v433 = vunpack.c.l.s4 1983009808
        %v434 = vunpack.c.0.s8 %v433
        %v435 = vlaneseq
        %v436 = vshrl.u32 %v435, 7
        %v437 = vsub.s32 %v434, %v436
        %v438 = vrot.slane %v424, %v437
        %439 = vrot.lane.b32.xlu0 %v431, 90
        %v440 = vpop.permute.xlu0 %439
        %441 = vrot.lane.b32.xlu0 %v438, 90
        %v442 = vpop.permute.xlu0 %441
        %v443 = vrot.slane %v440, 4
        %v444 = vrot.slane %v442, 4
        %v445 = vsel %vm233, %v443, %v444
        %vm446 = vcmask 736256
        %v447 = vsel %vm446, %v440, %v445
        %450 = vst [vmem:[#allocation2 + $0x30] sm:$0x33] %v447
        %451 = vst.msk [vmem:[#allocation2 + $0x38] sm:$0x3] %vm208, %v442
        %v452 = vld [vmem:[%s1] sm:$0xf]
        %v453 = vld [vmem:[#allocation2] sm:$0xff]
        %v454 = vld [vmem:[#allocation2 + $0x8] sm:$0xf]
        %v455 = vld [vmem:[#allocation2 + $0xc] sm:$0xff]
        %v456 = vld [vmem:[#allocation2 + $0x14] sm:$0xf]
        %v457 = vld [vmem:[#allocation2 + $0x18] sm:$0xff]
        %v458 = vld [vmem:[#allocation2 + $0x20] sm:$0xf]
        %v459 = vld [vmem:[#allocation2 + $0x24] sm:$0xff]
        %v460 = vld [vmem:[#allocation2 + $0x2c] sm:$0xf]
        %v461 = vld [vmem:[#allocation2 + $0x30] sm:$0x33]
        %v462 = vld [vmem:[#allocation2 + $0x38] sm:$0x3]
        %v463 = vld [vmem:[%s2] sm:$0xff]
        %465 = vset.pattern.permute.xlu0 0
        %466 = vperm.xlu0 %465, %v463
        %v467 = vpop.permute.xlu0 %466
        %v479 = vunpack.c.l.b16 %v453
        %v480 = vunpack.c.h.b16 %v453
        %v481 = vunpack.c.l.b16 %v454
        %v482 = vunpack.c.l.b16 %v455
        %v483 = vunpack.c.h.b16 %v455
        %v484 = vunpack.c.l.b16 %v456
        %v485 = vunpack.c.l.b16 %v457
        %v486 = vunpack.c.h.b16 %v457
        %v487 = vunpack.c.l.b16 %v458
        %v488 = vunpack.c.l.b16 %v459
        %v489 = vunpack.c.h.b16 %v459
        %v490 = vunpack.c.l.b16 %v460
        %v491 = vunpack.c.l.b16 %v461
        %v492 = vunpack.c.h.b16 %v461
        %v493 = vunpack.c.l.b16 %v462
        %v494 = vpack.c.b16 %v482, %v479
        %v495 = vpack.c.b16 %v483, %v480
        %v496 = vpack.c.b16 %v484, %v481
        %v497 = vpack.c.b16 %v488, %v485
        %v498 = vpack.c.b16 %v489, %v486
        %v499 = vpack.c.b16 %v490, %v487
        %v500 = vpack.c.b16 %v491, %v491
        %v501 = vpack.c.b16 %v492, %v492
        %v502 = vpack.c.b16 %v493, %v493
        %vm509 = vcmask 293888
        %v511 = vsel %vm509, %v452, 0
        %vm513 = vcmask 1041408
        %v515 = vsel %vm513, %v500, 0
        %v518 = vsel %vm513, %v501, 0
        %v521 = vsel %vm513, %v502, 0
        %523 = vmatprep.subr.bf16.mxu0 %v495
        %524 = vmatpush1.bf16.msra.mxu0 %v494
        %525 = vmatprep.subr.bf16.mxu0 %v498
        %526 = vmatpush1.bf16.msra.mxu0 %v497
        %527 = vmatprep.subr.bf16.mxu0 %v518
        %528 = vmatpush1.bf16.msra.mxu0 %v515
        %529 = vmatprep.subr.bf16.mxu0 0
        %530 = vmatpush1.bf16.msra.mxu0 0
        %531 = vmatprep.subr.bf16.mxu0 0
        %532 = vmatpush1.bf16.msra.mxu0 0
        %533 = vmatprep.subr.bf16.mxu0 0
        %534 = vmatpush1.bf16.msra.mxu0 0
        %535 = vmatprep.subr.bf16.mxu0 0
        %536 = vmatpush1.bf16.msra.mxu0 0
        %537 = vmatprep.subr.bf16.mxu0 0
        %538 = vmatpush1.bf16.msra.mxu0 0
        %539 = vmatprep.subr.bf16.mxu0 0
        %540 = vmatpush1.bf16.msra.mxu0 0
        %541 = vmatprep.subr.bf16.mxu0 0
        %542 = vmatpush1.bf16.msra.mxu0 0
        %543 = vmatprep.subr.bf16.mxu0 0
        %544 = vmatpush1.bf16.msra.mxu0 0
        %545 = vmatprep.subr.bf16.mxu0 0
        %546 = vmatpush1.bf16.msra.mxu0 0
        %547 = vmatprep.subr.bf16.mxu0 0
        %548 = vmatpush1.bf16.msra.mxu0 0
        %549 = vmatprep.subr.bf16.mxu0 0
        %550 = vmatpush1.bf16.msra.mxu0 0
        %551 = vmatprep.subr.bf16.mxu0 0
        %552 = vmatpush1.bf16.msra.mxu0 0
        %553 = vmatprep.subr.bf16.mxu0 0
        %554 = vmatpush1.bf16.msra.mxu0 0
        %555 = vmatprep.mubr.bf16.mxu0 0
        %556 = vmatmul.mubr.bf16.gmra.mrb[0].mxu0 %v511
        %v557 = vpop.f32.mrb[0].mxu0
        %v558 = vadd.f32 %v467, %v557
        %v559 = vpop.f32.mrb[0].mxu0
        %v560 = vadd.f32 %v467, %v559
        %v561 = vpop.f32.mrb[0].mxu0
        %v562 = vpop.f32.mrb[0].mxu0
        %563 = vdwg.mxu0
        %564 = vmatprep.subr.bf16.mxu0 0
        %565 = vmatpush1.bf16.msra.mxu0 %v496
        %566 = vmatprep.subr.bf16.mxu0 0
        %567 = vmatpush1.bf16.msra.mxu0 %v499
        %568 = vmatprep.subr.bf16.mxu0 0
        %569 = vmatpush1.bf16.msra.mxu0 %v521
        %570 = vmatprep.subr.bf16.mxu0 0
        %571 = vmatpush1.bf16.msra.mxu0 0
        %572 = vmatprep.subr.bf16.mxu0 0
        %573 = vmatpush1.bf16.msra.mxu0 0
        %574 = vmatprep.subr.bf16.mxu0 0
        %575 = vmatpush1.bf16.msra.mxu0 0
        %576 = vmatprep.subr.bf16.mxu0 0
        %577 = vmatpush1.bf16.msra.mxu0 0
        %578 = vmatprep.subr.bf16.mxu0 0
        %579 = vmatpush1.bf16.msra.mxu0 0
        %580 = vmatprep.subr.bf16.mxu0 0
        %581 = vmatpush1.bf16.msra.mxu0 0
        %582 = vmatprep.subr.bf16.mxu0 0
        %583 = vmatpush1.bf16.msra.mxu0 0
        %584 = vmatprep.subr.bf16.mxu0 0
        %585 = vmatpush1.bf16.msra.mxu0 0
        %586 = vmatprep.subr.bf16.mxu0 0
        %587 = vmatpush1.bf16.msra.mxu0 0
        %588 = vmatprep.subr.bf16.mxu0 0
        %589 = vmatpush1.bf16.msra.mxu0 0
        %590 = vmatprep.subr.bf16.mxu0 0
        %591 = vmatpush1.bf16.msra.mxu0 0
        %592 = vmatprep.subr.bf16.mxu0 0
        %593 = vmatpush1.bf16.msra.mxu0 0
        %594 = vmatprep.subr.bf16.mxu0 0
        %595 = vmatpush1.bf16.msra.mxu0 0
        %596 = vmatprep.mubr.bf16.mxu0 0
        %597 = vmatmul.mubr.bf16.gmra.mrb[0].mxu0 %v511
        %v598 = vpop.f32.mrb[0].mxu0
        %v599 = vadd.f32 %v467, %v598
        %v600 = vpop.f32.mrb[0].mxu0
        %v601 = vpop.f32.mrb[0].mxu0
        %v602 = vpop.f32.mrb[0].mxu0
        %603 = vdwg.mxu0
        %v604 = vmax.f32 %v558, 0.0
        %v605 = vmax.f32 %v560, 0.0
        %v606 = vmax.f32 %v599, 0.0
        %607 = vst [vmem:[%s186] sm:$0xff] %v604
        %608 = vst [vmem:[%s186 + $0x8] sm:$0xff] %v605
        %vm609 = vcmask 261120
        %610 = vst.msk [vmem:[%s186 + $0x10] sm:$0xff] %vm609, %v606
        %s611 = sand.u32 %s96, 1
        %s612 = scalar_lea.sflag [#allocation5], %s611
        %s613 = sand.u32 %s96, 1
        %s614 = smul.addr %s613, 24
        %s615 = scalar_lea.vmem [#allocation6], %s614
        // Predicated region
        $region37: #{tpu_custom_call.1} parent=31 // pred_check
          %p616 = pneg %p106
        $region38: #{tpu_custom_call.1} parent=31 // pred_check_branch
          %618 = sbr.rel (%p616) target = $region40
        $region39: #{tpu_custom_call.1} parent=31 // pred_region
          %s620 = ssub.s32 384, 384
          %621 = vsyncadd %s612, %s620
          %s622 = smul.addr %s20, 3
          %s623 = smul.addr %s622, 128
          %s624 = scalar_lea.hbm %s3, %s623
          %s626 = sshll.u32 %s615, 4
          %s627 = int_to_ptr.vmem [resolvable:$true] %s626
          %629 = dma.vmem_to_hbm [thread:$0]  %s627, 384, %s624, %s612
        $region40: #{tpu_custom_call.1} parent=31 // pred_fallthru
          _
      $region32: #{tpu_custom_call.1} parent=5 // pred_fallthru
        _
      %p630 = scmp.le.s32.totalorder 2, %s15
      // Predicated region
      $region41: #{tpu_custom_call.1} parent=5 // pred_check
        %p631 = pneg %p630
      $region42: #{tpu_custom_call.1} parent=5 // pred_check_branch
        %633 = sbr.rel (%p631) target = $region44
      $region43: #{tpu_custom_call.1} parent=5 // pred_region
        %s634 = ssub.s32 %s15, 2
        // Predicated region
        $region45: #{tpu_custom_call.1} parent=43 // pred_check
          %p635 = pneg %p112
        $region46: #{tpu_custom_call.1} parent=43 // pred_check_branch
          %637 = sbr.rel (%p635) target = $region48
        $region47: #{tpu_custom_call.1} parent=43 // pred_region
          %s638 = sand.u32 %s97, 1
          %s639 = scalar_lea.sflag [#allocation5], %s638
          %s640 = sand.u32 %s97, 1
          %s641 = smul.addr %s640, 24
          %s642 = scalar_lea.vmem [#allocation6], %s641
          %643 = dma.done %s639, 384
        $region48: #{tpu_custom_call.1} parent=43 // pred_fallthru
          _
      $region44: #{tpu_custom_call.1} parent=5 // pred_fallthru
        _
    $region6: #{tpu_custom_call.1} parent=1 // loop_footer
      %s19 = sadd.s32 1, %s15
    $region7: #{tpu_custom_call.1} parent=1 // loop_footer_branch
      %14 = sbr.rel target = $region3
    $region8: #{tpu_custom_call.1} parent=1 // loop_exit
      _
    %644 = vsyncpa [#allocation4], 1
    %s645 = scalar_lea.sflag [#allocation4], 1
    %646 = vsyncpa %s645, 1
    %647 = vsyncpa [#allocation5], 1
    %s648 = scalar_lea.sflag [#allocation5], 1
    %649 = vsyncpa %s648, 1

</llo_original>
